<compile_context>
chip_gen: v6e
topology: v6e:2x2x1
jax: 0.10.0
libtpu: 0.0.40
codegen_flags: <defaults>
</compile_context>

<pallas_src>
from functools import partial

import jax
import jax.numpy as jnp
from jax.experimental import pallas as pl
from jax.experimental.pallas import tpu as pltpu


def _round_up(x, m):
    return ((x + m - 1) // m) * m


def _pick_tile(dim, max_tile):
    """Sublane-style axis: full-extent block when it fits, else max_tile."""
    if dim <= max_tile:
        return dim, dim            # full dim -> no alignment / padding needed
    return max_tile, _round_up(dim, max_tile)


def _pick_lane_tile(dim, max_tile):
    """Output lane (last) axis: keep the tile a multiple of 128 so the
    output stores are unmasked (lane-dense)."""
    padded = _round_up(dim, 128)
    if padded <= max_tile:
        return padded, padded
    return max_tile, _round_up(dim, max_tile)


def _activate(z, activation):
    if activation in ("swish", "silu"):
        # Swish = z * sigmoid(z); exp + approximate reciprocal both run on
        # the EUP slot, keeping the VALU free.  Kept in f32 (v5e-safe).
        return z * pl.reciprocal(1.0 + jnp.exp(-z), approx=True)
    if activation == "relu":
        return jnp.maximum(z, 0.0)
    # TODO(synk): arbitrary Python activation callables from the Torch module
    # cannot be passed through; they are mapped by name (swish/relu/identity).
    return z


def _fc_body(x_ref, w_ref, b_ref, o_ref, acc_ref, *, activation):
    k = pl.program_id(3)
    eb = x_ref.shape[0]

    @pl.when(k == 0)
    def _init():
        acc_ref[...] = jnp.zeros_like(acc_ref)

    # One MXU matmul per ensemble member packed in this block; bf16 operands,
    # f32 accumulation.
    for e in range(eb):
        acc_ref[e] += jnp.dot(x_ref[e], w_ref[e],
                              preferred_element_type=jnp.float32)

    @pl.when(k == pl.num_programs(3) - 1)
    def _epilogue():
        # (Eb, tm, tn) + (Eb, 1, tn) bias broadcast, then activation, all f32.
        z = acc_ref[...] + b_ref[...].astype(jnp.float32)
        o_ref[...] = _activate(z, activation).astype(o_ref.dtype)


def _fc_kernel_inplace(x_ref, w_ref, b_ref, o_ref, *, activation):
    # f32 output: the output block is resident across the K axis (index_map
    # ignores k), so it doubles as the accumulator -> no scratch needed.
    _fc_body(x_ref, w_ref, b_ref, o_ref, o_ref, activation=activation)


def _fc_kernel_scratch(x_ref, w_ref, b_ref, o_ref, acc_ref, *, activation):
    _fc_body(x_ref, w_ref, b_ref, o_ref, acc_ref, activation=activation)


def fc_layer(x, weight, bias, *, activation="swish",
             compute_dtype=jnp.bfloat16,
             max_tm=256, max_tn=512, max_tk=512,
             block_vmem_budget=12 << 20):
    """activation(bmm(x, weight) + bias[:, None, :]) — FCLayer.forward."""
    E, B, I = x.shape
    Ew, Iw, O = weight.shape
    assert (Ew, Iw) == (E, I) and bias.shape == (E, O)

    out_dtype = x.dtype
    in_bytes = jnp.dtype(compute_dtype).itemsize
    out_bytes = jnp.dtype(out_dtype).itemsize
    bias_bytes = jnp.dtype(bias.dtype).itemsize

    # Validate / fix tile caps so tiled dims stay aligned for bf16 operands.
    max_tm = max(16, _round_up(max_tm, 16))
    max_tk = max(128, _round_up(max_tk, 128))
    max_tn = max(128, _round_up(max_tn, 128))

    tm, Bp = _pick_tile(B, max_tm)            # M: full-extent or 256-tile
    tk, Ip = _pick_tile(I, max_tk)            # K: pad only if it tiles
    tn, Op = _pick_lane_tile(O, max_tn)       # N: always lane-dense (x128)

    # f32 output -> accumulate directly in the resident output block.
    acc_in_out = out_dtype == jnp.float32

    # Fold ensemble members into one block when each member is a single MXU
    # tile (MBPO-sized shapes): amortizes the ~0.35 us per-grid-step cost.
    eb = 1
    if (Bp // tm) * (Op // tn) * (Ip // tk) == 1:
        def footprint(e):
            blk = e * (tm * tk * in_bytes + tk * tn * in_bytes
                       + tn * bias_bytes + tm * tn * out_bytes)
            acc = 0 if acc_in_out else e * tm * tn * 4
            return 2 * blk + acc
        for cand in range(E, 0, -1):
            if E % cand == 0 and footprint(cand) <= block_vmem_budget:
                eb = cand
                break

    # Cast MXU operands to bf16 (accumulation stays f32).  Pad only what is
    # needed: K with zeros (correctness), N for lane-dense output, M only if
    # B exceeds the tile cap and is not a multiple of it.
    x_c = x.astype(compute_dtype)
    w_c = weight.astype(compute_dtype)
    if (Bp, Ip) != (B, I):
        x_c = jnp.pad(x_c, ((0, 0), (0, Bp - B), (0, Ip - I)))
    if (Ip, Op) != (I, O):
        w_c = jnp.pad(w_c, ((0, 0), (0, Ip - I), (0, Op - O)))
    b_c = bias if Op == O else jnp.pad(bias, ((0, 0), (0, Op - O)))
    bias3 = b_c[:, None, :]                                   # (E, 1, Op)

    grid = (E // eb, Bp // tm, Op // tn, Ip // tk)

    if acc_in_out:
        kernel = partial(_fc_kernel_inplace, activation=activation)
        scratch_shapes = ()
    else:
        kernel = partial(_fc_kernel_scratch, activation=activation)
        scratch_shapes = (pltpu.VMEM((eb, tm, tn), jnp.float32),)

    # Explicit scoped-VMEM limit: double-buffered footprint with 4x margin,
    # floored at 16 MiB and capped at 48 MiB (safe on v7x's 64 MiB/TC).
    blk_bytes = eb * (tm * tk * in_bytes + tk * tn * in_bytes
                      + tn * bias_bytes + tm * tn * out_bytes)
    acc_bytes = 0 if acc_in_out else eb * tm * tn * 4
    vmem_limit = int(min(max(4 * (2 * blk_bytes + acc_bytes), 16 << 20),
                         48 << 20))

    out = pl.pallas_call(
        kernel,
        out_shape=jax.ShapeDtypeStruct((E, Bp, Op), out_dtype),
        grid_spec=pltpu.PrefetchScalarGridSpec(
            num_scalar_prefetch=0,
            grid=grid,
            in_specs=[
                pl.BlockSpec((eb, tm, tk), lambda e, i, j, k: (e, i, k)),
                pl.BlockSpec((eb, tk, tn), lambda e, i, j, k: (e, k, j)),
                pl.BlockSpec((eb, 1, tn), lambda e, i, j, k: (e, 0, j)),
            ],
            out_specs=pl.BlockSpec((eb, tm, tn), lambda e, i, j, k: (e, i, j)),
            scratch_shapes=scratch_shapes,
        ),
        compiler_params=pltpu.CompilerParams(
            # E / M / N are independent (megacore-shardable on v7x); K is the
            # reduction carried in the resident accumulator, so it must be
            # innermost and "arbitrary".
            dimension_semantics=("parallel", "parallel", "parallel",
                                 "arbitrary"),
            vmem_limit_bytes=vmem_limit,
        ),
    )(x_c, w_c, bias3)

    if (Bp, Op) != (B, O):
        out = out[:, :B, :O]
    return out


if __name__ == "__main__":
    # Small shapes consistent with FCLayer: ensemble=4, batch=8,
    # input_dim=32, output_dim=32.
    E, B, I, O = 4, 8, 32, 32
    key = jax.random.PRNGKey(0)
    kx, kw, kb = jax.random.split(key, 3)
    x = jax.random.normal(kx, (E, B, I), dtype=jnp.float32)
    w = jax.random.normal(kw, (E, I, O), dtype=jnp.float32) / jnp.sqrt(I)
    b = 0.1 * jax.random.normal(kb, (E, O), dtype=jnp.float32)

    y = fc_layer(x, w, b, activation="swish")
    jax.block_until_ready(y)

    # Matched-precision reference: bf16 MXU operands, f32 accumulation,
    # exact sigmoid (isolates the approximate-reciprocal error).
    z16 = jnp.einsum("ebi,eio->ebo",
                     x.astype(jnp.bfloat16), w.astype(jnp.bfloat16),
                     preferred_element_type=jnp.float32) + b[:, None, :]
    y_ref16 = z16 * jax.nn.sigmoid(z16)
    # Full-f32 reference (what the PyTorch module computes).
    z32 = jnp.einsum("ebi,eio->ebo", x, w) + b[:, None, :]
    y_ref32 = z32 * jax.nn.sigmoid(z32)

    assert y.shape == (E, B, O) and y.dtype == x.dtype
    assert float(jnp.max(jnp.abs(y - y_ref16))) < 1e-2   # kernel numerics
    assert float(jnp.max(jnp.abs(y - y_ref32))) < 5e-2   # vs f32 module

    print("KERNEL_OK")
</pallas_src>

<mosaic_0001>
module attributes {stable_mosaic.version = 11 : i64} {
  func.func @_fc_kernel_inplace(%arg0: i32, %arg1: i32, %arg2: i32, %arg3: i32, %arg4: memref<4x8x32xbf16, #tpu.memory_space<vmem>>, %arg5: memref<4x32x128xbf16, #tpu.memory_space<vmem>>, %arg6: memref<4x1x128xf32, #tpu.memory_space<vmem>>, %arg7: memref<4x8x128xf32, #tpu.memory_space<vmem>>) attributes {dimension_semantics = [#tpu.dimension_semantics<parallel>, #tpu.dimension_semantics<parallel>, #tpu.dimension_semantics<parallel>, #tpu.dimension_semantics<arbitrary>], iteration_bounds = array<i64: 1, 1, 1, 1>, scalar_prefetch = 0 : i64, scratch_operands = 0 : i64, tpu.core_type = #tpu.core_type<tc>, window_params = [{transform_indices = @transform_0, window_bounds = array<i64: 4, 8, 32>}, {transform_indices = @transform_1, window_bounds = array<i64: 4, 32, 128>}, {transform_indices = @transform_2, window_bounds = array<i64: 4, 1, 128>}, {transform_indices = @transform_3, window_bounds = array<i64: 4, 8, 128>}]} {
    %c0_i32 = arith.constant 0 : i32
    %0 = arith.cmpi eq, %arg3, %c0_i32 : i32
    %1 = arith.extui %0 : i1 to i32
    %c0_i32_0 = arith.constant 0 : i32
    %2 = arith.cmpi ne, %1, %c0_i32_0 : i32
    scf.if %2 {
      %cst_50 = arith.constant 0.000000e+00 : f32
      %50 = vector.broadcast %cst_50 : f32 to vector<4x8x128xf32>
      %c0_51 = arith.constant 0 : index
      %c0_52 = arith.constant 0 : index
      %c0_53 = arith.constant 0 : index
      %51 = vector.load %arg7[%c0_51, %c0_52, %c0_53] : memref<4x8x128xf32, #tpu.memory_space<vmem>>, vector<4x8x128xf32>
      tpu.vector_store %arg7[%c0_51, %c0_52, %c0_53], %50 {strides = array<i32>} : memref<4x8x128xf32, #tpu.memory_space<vmem>>, vector<4x8x128xf32>,
    } else {
    }
    %c0 = arith.constant 0 : index
    %c0_1 = arith.constant 0 : index
    %c0_2 = arith.constant 0 : index
    %3 = vector.load %arg7[%c0, %c0_1, %c0_2] : memref<4x8x128xf32, #tpu.memory_space<vmem>>, vector<1x8x128xf32>
    %4 = vector.shape_cast %3 : vector<1x8x128xf32> to vector<8x128xf32>
    %c0_3 = arith.constant 0 : index
    %c0_4 = arith.constant 0 : index
    %c0_5 = arith.constant 0 : index
    %5 = vector.load %arg4[%c0_3, %c0_4, %c0_5] : memref<4x8x32xbf16, #tpu.memory_space<vmem>>, vector<1x8x32xbf16>
    %6 = vector.shape_cast %5 : vector<1x8x32xbf16> to vector<8x32xbf16>
    %c0_6 = arith.constant 0 : index
    %c0_7 = arith.constant 0 : index
    %c0_8 = arith.constant 0 : index
    %7 = vector.load %arg5[%c0_6, %c0_7, %c0_8] : memref<4x32x128xbf16, #tpu.memory_space<vmem>>, vector<1x32x128xbf16>
    %8 = vector.shape_cast %7 : vector<1x32x128xbf16> to vector<32x128xbf16>
    %cst = arith.constant dense<0.000000e+00> : vector<8x128xf32>
    %9 = tpu.matmul %6, %8, %cst {dimension_numbers = #tpu.dot_dimension_numbers<[1], [0], [0], [1], [0, 0, 1, 1], [], []>} : vector<8x32xbf16>, vector<32x128xbf16>, vector<8x128xf32> -> vector<8x128xf32>
    %10 = arith.addf %4, %9 : vector<8x128xf32>
    %c0_9 = arith.constant 0 : index
    %c0_10 = arith.constant 0 : index
    %c0_11 = arith.constant 0 : index
    %11 = vector.load %arg7[%c0_9, %c0_10, %c0_11] : memref<4x8x128xf32, #tpu.memory_space<vmem>>, vector<1x8x128xf32>
    %12 = vector.shape_cast %11 : vector<1x8x128xf32> to vector<8x128xf32>
    %13 = vector.shape_cast %10 : vector<8x128xf32> to vector<1x8x128xf32>
    tpu.vector_store %arg7[%c0_9, %c0_10, %c0_11], %13 {strides = array<i32>} : memref<4x8x128xf32, #tpu.memory_space<vmem>>, vector<1x8x128xf32>,
    %c1 = arith.constant 1 : index
    %c0_12 = arith.constant 0 : index
    %c0_13 = arith.constant 0 : index
    %14 = vector.load %arg7[%c1, %c0_12, %c0_13] : memref<4x8x128xf32, #tpu.memory_space<vmem>>, vector<1x8x128xf32>
    %15 = vector.shape_cast %14 : vector<1x8x128xf32> to vector<8x128xf32>
    %c1_14 = arith.constant 1 : index
    %c0_15 = arith.constant 0 : index
    %c0_16 = arith.constant 0 : index
    %16 = vector.load %arg4[%c1_14, %c0_15, %c0_16] : memref<4x8x32xbf16, #tpu.memory_space<vmem>>, vector<1x8x32xbf16>
    %17 = vector.shape_cast %16 : vector<1x8x32xbf16> to vector<8x32xbf16>
    %c1_17 = arith.constant 1 : index
    %c0_18 = arith.constant 0 : index
    %c0_19 = arith.constant 0 : index
    %18 = vector.load %arg5[%c1_17, %c0_18, %c0_19] : memref<4x32x128xbf16, #tpu.memory_space<vmem>>, vector<1x32x128xbf16>
    %19 = vector.shape_cast %18 : vector<1x32x128xbf16> to vector<32x128xbf16>
    %cst_20 = arith.constant dense<0.000000e+00> : vector<8x128xf32>
    %20 = tpu.matmul %17, %19, %cst_20 {dimension_numbers = #tpu.dot_dimension_numbers<[1], [0], [0], [1], [0, 0, 1, 1], [], []>} : vector<8x32xbf16>, vector<32x128xbf16>, vector<8x128xf32> -> vector<8x128xf32>
    %21 = arith.addf %15, %20 : vector<8x128xf32>
    %c1_21 = arith.constant 1 : index
    %c0_22 = arith.constant 0 : index
    %c0_23 = arith.constant 0 : index
    %22 = vector.load %arg7[%c1_21, %c0_22, %c0_23] : memref<4x8x128xf32, #tpu.memory_space<vmem>>, vector<1x8x128xf32>
    %23 = vector.shape_cast %22 : vector<1x8x128xf32> to vector<8x128xf32>
    %24 = vector.shape_cast %21 : vector<8x128xf32> to vector<1x8x128xf32>
    tpu.vector_store %arg7[%c1_21, %c0_22, %c0_23], %24 {strides = array<i32>} : memref<4x8x128xf32, #tpu.memory_space<vmem>>, vector<1x8x128xf32>,
    %c2 = arith.constant 2 : index
    %c0_24 = arith.constant 0 : index
    %c0_25 = arith.constant 0 : index
    %25 = vector.load %arg7[%c2, %c0_24, %c0_25] : memref<4x8x128xf32, #tpu.memory_space<vmem>>, vector<1x8x128xf32>
    %26 = vector.shape_cast %25 : vector<1x8x128xf32> to vector<8x128xf32>
    %c2_26 = arith.constant 2 : index
    %c0_27 = arith.constant 0 : index
    %c0_28 = arith.constant 0 : index
    %27 = vector.load %arg4[%c2_26, %c0_27, %c0_28] : memref<4x8x32xbf16, #tpu.memory_space<vmem>>, vector<1x8x32xbf16>
    %28 = vector.shape_cast %27 : vector<1x8x32xbf16> to vector<8x32xbf16>
    %c2_29 = arith.constant 2 : index
    %c0_30 = arith.constant 0 : index
    %c0_31 = arith.constant 0 : index
    %29 = vector.load %arg5[%c2_29, %c0_30, %c0_31] : memref<4x32x128xbf16, #tpu.memory_space<vmem>>, vector<1x32x128xbf16>
    %30 = vector.shape_cast %29 : vector<1x32x128xbf16> to vector<32x128xbf16>
    %cst_32 = arith.constant dense<0.000000e+00> : vector<8x128xf32>
    %31 = tpu.matmul %28, %30, %cst_32 {dimension_numbers = #tpu.dot_dimension_numbers<[1], [0], [0], [1], [0, 0, 1, 1], [], []>} : vector<8x32xbf16>, vector<32x128xbf16>, vector<8x128xf32> -> vector<8x128xf32>
    %32 = arith.addf %26, %31 : vector<8x128xf32>
    %c2_33 = arith.constant 2 : index
    %c0_34 = arith.constant 0 : index
    %c0_35 = arith.constant 0 : index
    %33 = vector.load %arg7[%c2_33, %c0_34, %c0_35] : memref<4x8x128xf32, #tpu.memory_space<vmem>>, vector<1x8x128xf32>
    %34 = vector.shape_cast %33 : vector<1x8x128xf32> to vector<8x128xf32>
    %35 = vector.shape_cast %32 : vector<8x128xf32> to vector<1x8x128xf32>
    tpu.vector_store %arg7[%c2_33, %c0_34, %c0_35], %35 {strides = array<i32>} : memref<4x8x128xf32, #tpu.memory_space<vmem>>, vector<1x8x128xf32>,
    %c3 = arith.constant 3 : index
    %c0_36 = arith.constant 0 : index
    %c0_37 = arith.constant 0 : index
    %36 = vector.load %arg7[%c3, %c0_36, %c0_37] : memref<4x8x128xf32, #tpu.memory_space<vmem>>, vector<1x8x128xf32>
    %37 = vector.shape_cast %36 : vector<1x8x128xf32> to vector<8x128xf32>
    %c3_38 = arith.constant 3 : index
    %c0_39 = arith.constant 0 : index
    %c0_40 = arith.constant 0 : index
    %38 = vector.load %arg4[%c3_38, %c0_39, %c0_40] : memref<4x8x32xbf16, #tpu.memory_space<vmem>>, vector<1x8x32xbf16>
    %39 = vector.shape_cast %38 : vector<1x8x32xbf16> to vector<8x32xbf16>
    %c3_41 = arith.constant 3 : index
    %c0_42 = arith.constant 0 : index
    %c0_43 = arith.constant 0 : index
    %40 = vector.load %arg5[%c3_41, %c0_42, %c0_43] : memref<4x32x128xbf16, #tpu.memory_space<vmem>>, vector<1x32x128xbf16>
    %41 = vector.shape_cast %40 : vector<1x32x128xbf16> to vector<32x128xbf16>
    %cst_44 = arith.constant dense<0.000000e+00> : vector<8x128xf32>
    %42 = tpu.matmul %39, %41, %cst_44 {dimension_numbers = #tpu.dot_dimension_numbers<[1], [0], [0], [1], [0, 0, 1, 1], [], []>} : vector<8x32xbf16>, vector<32x128xbf16>, vector<8x128xf32> -> vector<8x128xf32>
    %43 = arith.addf %37, %42 : vector<8x128xf32>
    %c3_45 = arith.constant 3 : index
    %c0_46 = arith.constant 0 : index
    %c0_47 = arith.constant 0 : index
    %44 = vector.load %arg7[%c3_45, %c0_46, %c0_47] : memref<4x8x128xf32, #tpu.memory_space<vmem>>, vector<1x8x128xf32>
    %45 = vector.shape_cast %44 : vector<1x8x128xf32> to vector<8x128xf32>
    %46 = vector.shape_cast %43 : vector<8x128xf32> to vector<1x8x128xf32>
    tpu.vector_store %arg7[%c3_45, %c0_46, %c0_47], %46 {strides = array<i32>} : memref<4x8x128xf32, #tpu.memory_space<vmem>>, vector<1x8x128xf32>,
    %c0_i32_48 = arith.constant 0 : i32
    %47 = arith.cmpi eq, %arg3, %c0_i32_48 : i32
    %48 = arith.extui %47 : i1 to i32
    %c0_i32_49 = arith.constant 0 : i32
    %49 = arith.cmpi ne, %48, %c0_i32_49 : i32
    scf.if %49 {
      %c0_50 = arith.constant 0 : index
      %c0_51 = arith.constant 0 : index
      %c0_52 = arith.constant 0 : index
      %50 = vector.load %arg7[%c0_50, %c0_51, %c0_52] : memref<4x8x128xf32, #tpu.memory_space<vmem>>, vector<4x8x128xf32>
      %c0_53 = arith.constant 0 : index
      %c0_54 = arith.constant 0 : index
      %c0_55 = arith.constant 0 : index
      %51 = vector.load %arg6[%c0_53, %c0_54, %c0_55] : memref<4x1x128xf32, #tpu.memory_space<vmem>>, vector<4x1x128xf32>
      %52 = vector.broadcast %51 : vector<4x1x128xf32> to vector<4x8x128xf32>
      %53 = arith.addf %50, %52 : vector<4x8x128xf32>
      %cst_56 = arith.constant 0.000000e+00 : f32
      %54 = vector.broadcast %cst_56 : f32 to vector<4x8x128xf32>
      %55 = arith.subf %54, %53 : vector<4x8x128xf32>
      %56 = math.exp %55 : vector<4x8x128xf32>
      %cst_57 = arith.constant 1.000000e+00 : f32
      %57 = vector.broadcast %cst_57 : f32 to vector<4x8x128xf32>
      %58 = arith.addf %57, %56 : vector<4x8x128xf32>
      %59 = tpu.reciprocal %58 {approx = true} : vector<4x8x128xf32> -> vector<4x8x128xf32>
      %60 = arith.mulf %53, %59 : vector<4x8x128xf32>
      %c0_58 = arith.constant 0 : index
      %c0_59 = arith.constant 0 : index
      %c0_60 = arith.constant 0 : index
      %61 = vector.load %arg7[%c0_58, %c0_59, %c0_60] : memref<4x8x128xf32, #tpu.memory_space<vmem>>, vector<4x8x128xf32>
      tpu.vector_store %arg7[%c0_58, %c0_59, %c0_60], %60 {strides = array<i32>} : memref<4x8x128xf32, #tpu.memory_space<vmem>>, vector<4x8x128xf32>,
    } else {
    }
    return
  }
  func.func @transform_0(%arg0: i32, %arg1: i32, %arg2: i32, %arg3: i32) -> (i32, i32, i32) {
    %c0_i32 = arith.constant 0 : i32
    return %arg0, %arg1, %arg3 : i32, i32, i32
  }
  func.func @transform_1(%arg0: i32, %arg1: i32, %arg2: i32, %arg3: i32) -> (i32, i32, i32) {
    %c0_i32 = arith.constant 0 : i32
    return %arg0, %arg3, %arg2 : i32, i32, i32
  }
  func.func @transform_2(%arg0: i32, %arg1: i32, %arg2: i32, %arg3: i32) -> (i32, i32, i32) {
    %c0_i32 = arith.constant 0 : i32
    %c0_i32_0 = arith.constant 0 : i32
    return %arg0, %c0_i32, %arg2 : i32, i32, i32
  }
  func.func @transform_3(%arg0: i32, %arg1: i32, %arg2: i32, %arg3: i32) -> (i32, i32, i32) {
    %c0_i32 = arith.constant 0 : i32
    return %arg0, %arg1, %arg2 : i32, i32, i32
  }
}

</mosaic_0001>

<llo_original>
// kernel: tpu_custom_call.1
$region0: #{tpu_custom_call.1}
  #allocation0 [shape = 'u32[]', space=smem, size = 0x4, offset = 0x4, fixed_abs, tag = 'smem constant byte address 0x4 - core index']
  #allocation1 [shape = 'u32[144,128]{1,0:T(1,128)}', space=vmem, size = 0x12000, scoped, tag = 'internal scratch']
  %s0 = inlined_call_operand.hbm [shape: bf16[4,8,32], index: 0, kind: input, shape index: {}]
  %s1 = inlined_call_operand.hbm [shape: bf16[4,32,128], index: 1, kind: input, shape index: {}]
  %s2 = inlined_call_operand.hbm [shape: f32[4,1,128], index: 2, kind: input, shape index: {}]
  %s3 = inlined_call_operand.hbm [shape: f32[4,8,128], index: 3, kind: output, shape index: {}]
  %s4 = sld [smem:[#allocation0]]
  $region42: #{tpu_custom_call.1} parent=0
    _
  %s6 = ssub.s32 1, %s4
  %s7 = scalar_select 0, %s6, %s4
  $region1: #{tpu_custom_call.1} parent=0
    #allocation2 [shape = 'u8[8192]{0}', space=vmem, size = 0x2000, scoped, tag = 'input window, operand 0, single buffered']
    #allocation3 [shape = 's32[1]{0}', space=sflag, size = 0x4, scoped, tag = 'scoped memory for tpu_custom_call.1']
    #allocation4 [shape = 's32[1]{0}', space=sflag, size = 0x4, scoped, tag = 'scoped memory for tpu_custom_call.1']
    #allocation5 [shape = 'u8[32768]{0}', space=vmem, size = 0x8000, scoped, tag = 'input window, operand 1, single buffered']
    #allocation6 [shape = 's32[1]{0}', space=sflag, size = 0x4, scoped, tag = 'scoped memory for tpu_custom_call.1']
    #allocation7 [shape = 'u8[2048]{0}', space=vmem, size = 0x800, scoped, tag = 'input window, operand 2, single buffered']
    #allocation8 [shape = 'u8[16384]{0}', space=vmem, size = 0x4000, scoped, tag = 'output window, operand 0, single buffered']
    %8 = vsyncpa [#allocation3], 0
    %9 = vsyncpa [#allocation6], 0
    %10 = vsyncpa [#allocation4], 0
    // Predicated region
    $region2: #{tpu_custom_call.1} parent=1 // pred_check
      _
    $region3: #{tpu_custom_call.1} parent=1 // pred_check_branch
      %12 = sbr.rel (0) target = $region5
    $region4: #{tpu_custom_call.1} parent=1 // pred_region
      %s14 = ssub.s32 256, 256
      %15 = vsyncadd [#allocation3], %s14
      %s16 = sshll.u32 [#allocation2], 4
      %s17 = int_to_ptr.vmem [resolvable:$true] %s16
      %22 = dma.hbm_to_vmem [thread:$0]  %s0, 256, %s17, [#allocation3], 64, 64, 4
    $region5: #{tpu_custom_call.1} parent=1 // pred_fallthru
      _
    // Predicated region
    $region6: #{tpu_custom_call.1} parent=1 // pred_check
      _
    $region7: #{tpu_custom_call.1} parent=1 // pred_check_branch
      %24 = sbr.rel (0) target = $region9
    $region8: #{tpu_custom_call.1} parent=1 // pred_region
      %s26 = ssub.s32 1024, 1024
      %27 = vsyncadd [#allocation6], %s26
      %s28 = sshll.u32 [#allocation5], 4
      %s29 = int_to_ptr.vmem [resolvable:$true] %s28
      %34 = dma.hbm_to_vmem [thread:$0]  %s1, 1024, %s29, [#allocation6], 64, 64, 4
    $region9: #{tpu_custom_call.1} parent=1 // pred_fallthru
      _
    // Predicated region
    $region10: #{tpu_custom_call.1} parent=1 // pred_check
      _
    $region11: #{tpu_custom_call.1} parent=1 // pred_check_branch
      %36 = sbr.rel (0) target = $region13
    $region12: #{tpu_custom_call.1} parent=1 // pred_region
      %s38 = ssub.s32 64, 64
      %39 = vsyncadd [#allocation6], %s38
      %s40 = sshll.u32 [#allocation7], 4
      %s41 = int_to_ptr.vmem [resolvable:$true] %s40
      %46 = dma.hbm_to_vmem [thread:$0]  %s2, 64, %s41, [#allocation6], 16, 16, 1
    $region13: #{tpu_custom_call.1} parent=1 // pred_fallthru
      _
    // Predicated region
    $region14: #{tpu_custom_call.1} parent=1 // pred_check
      _
    $region15: #{tpu_custom_call.1} parent=1 // pred_check_branch
      %48 = sbr.rel (0) target = $region17
    $region16: #{tpu_custom_call.1} parent=1 // pred_region
      %49 = dma.done [#allocation3], 256
    $region17: #{tpu_custom_call.1} parent=1 // pred_fallthru
      _
    // Predicated region
    $region18: #{tpu_custom_call.1} parent=1 // pred_check
      _
    $region19: #{tpu_custom_call.1} parent=1 // pred_check_branch
      %51 = sbr.rel (0) target = $region21
    $region20: #{tpu_custom_call.1} parent=1 // pred_region
      %52 = dma.done [#allocation6], 1024
    $region21: #{tpu_custom_call.1} parent=1 // pred_fallthru
      _
    // Predicated region
    $region22: #{tpu_custom_call.1} parent=1 // pred_check
      _
    $region23: #{tpu_custom_call.1} parent=1 // pred_check_branch
      %54 = sbr.rel (0) target = $region25
    $region24: #{tpu_custom_call.1} parent=1 // pred_region
      %55 = dma.done [#allocation6], 64
    $region25: #{tpu_custom_call.1} parent=1 // pred_fallthru
      _
    %p57 = scmp.eq.s32.totalorder 0, 0
    // Predicated region
    $region26: #{tpu_custom_call.1} parent=1 // pred_check
      %p58 = pneg %p57
    $region27: #{tpu_custom_call.1} parent=1 // pred_check_branch
      %60 = sbr.rel (%p58) target = $region29
    $region28: #{tpu_custom_call.1} parent=1 // pred_region
      %61 = vst [vmem:[#allocation8] sm:$0xff] 0.0
      %62 = vst [vmem:[#allocation8 + $0x8] sm:$0xff] 0.0
      %63 = vst [vmem:[#allocation8 + $0x10] sm:$0xff] 0.0
      %64 = vst [vmem:[#allocation8 + $0x18] sm:$0xff] 0.0
    $region29: #{tpu_custom_call.1} parent=1 // pred_fallthru
      _
    %v65 = vld [vmem:[#allocation8] sm:$0xff]
    %v66 = vld [vmem:[#allocation2] sm:$0xf]
    %v67 = vld [vmem:[#allocation5] sm:$0xf]
    %v68 = vld [vmem:[#allocation5 + $0x4] sm:$0xf]
    %v69 = vld [vmem:[#allocation5 + $0x8] sm:$0xf]
    %v70 = vld [vmem:[#allocation5 + $0xc] sm:$0xf]
    %v75 = vunpack.c.l.b16 %v67
    %v76 = vunpack.c.l.b16 %v68
    %v77 = vunpack.c.l.b16 %v69
    %v78 = vunpack.c.l.b16 %v70
    %v79 = vpack.c.b16 %v76, %v75
    %v80 = vpack.c.b16 %v78, %v77
    %vm83 = vcmask 261120
    %v85 = vsel %vm83, %v66, 0
    %87 = vmatprep.subr.bf16.mxu0 0
    %88 = vmatpush1.bf16.msra.mxu0 0
    %89 = vmatprep.subr.bf16.mxu0 0
    %90 = vmatpush1.bf16.msra.mxu0 0
    %91 = vmatprep.subr.bf16.mxu0 0
    %92 = vmatpush1.bf16.msra.mxu0 0
    %93 = vmatprep.subr.bf16.mxu0 0
    %94 = vmatpush1.bf16.msra.mxu0 0
    %95 = vmatprep.subr.bf16.mxu0 0
    %96 = vmatpush1.bf16.msra.mxu0 0
    %97 = vmatprep.subr.bf16.mxu0 0
    %98 = vmatpush1.bf16.msra.mxu0 0
    %99 = vmatprep.subr.bf16.mxu0 0
    %100 = vmatpush1.bf16.msra.mxu0 %v80
    %101 = vmatprep.subr.bf16.mxu0 0
    %102 = vmatpush1.bf16.msra.mxu0 %v79
    %103 = vmatprep.subr.bf16.mxu0 0
    %104 = vmatpush2.bf16.msra.mxu0 0
    %105 = vmatprep.subr.bf16.mxu0 0
    %106 = vmatpush2.bf16.msra.mxu0 0
    %107 = vmatprep.subr.bf16.mxu0 0
    %108 = vmatpush2.bf16.msra.mxu0 0
    %109 = vmatprep.subr.bf16.mxu0 0
    %110 = vmatpush2.bf16.msra.mxu0 0
    %111 = vmatprep.subr.bf16.mxu0 0
    %112 = vmatpush2.bf16.msra.mxu0 0
    %113 = vmatprep.subr.bf16.mxu0 0
    %114 = vmatpush2.bf16.msra.mxu0 0
    %115 = vmatprep.subr.bf16.mxu0 0
    %116 = vmatpush2.bf16.msra.mxu0 0
    %117 = vmatprep.subr.bf16.mxu0 0
    %118 = vmatpush2.bf16.msra.mxu0 0
    %119 = vmatprep.mubr.bf16.mxu0 0
    %120 = vmatmul.mubr.bf16.gmra.mxu0 %v85
    %v121 = vpop.f32.mrf.mxu0
    %v122 = vadd.f32 0.0, %v121
    %v123 = vpop.f32.mrf.mxu0
    %v124 = vpop.f32.mrf.mxu0
    %v125 = vpop.f32.mrf.mxu0
    %126 = vdwg.mxu0
    %v127 = vadd.f32 %v65, %v122
    %128 = vst [vmem:[#allocation8] sm:$0xff] %v127
    %s129 = scalar_lea.vmem [#allocation8], 8
    %v130 = vld [vmem:[%s129] sm:$0xff]
    %s131 = scalar_lea.vmem [#allocation2], 4
    %v132 = vld [vmem:[%s131] sm:$0xf]
    %s133 = scalar_lea.vmem [#allocation5], 16
    %v134 = vld [vmem:[%s133] sm:$0xf]
    %v135 = vld [vmem:[%s133 + $0x4] sm:$0xf]
    %v136 = vld [vmem:[%s133 + $0x8] sm:$0xf]
    %v137 = vld [vmem:[%s133 + $0xc] sm:$0xf]
    %v142 = vunpack.c.l.b16 %v134
    %v143 = vunpack.c.l.b16 %v135
    %v144 = vunpack.c.l.b16 %v136
    %v145 = vunpack.c.l.b16 %v137
    %v146 = vpack.c.b16 %v143, %v142
    %v147 = vpack.c.b16 %v145, %v144
    %v151 = vsel %vm83, %v132, 0
    %153 = vmatprep.subr.bf16.mxu0 0
    %154 = vmatpush1.bf16.msra.mxu0 0
    %155 = vmatprep.subr.bf16.mxu0 0
    %156 = vmatpush1.bf16.msra.mxu0 0
    %157 = vmatprep.subr.bf16.mxu0 0
    %158 = vmatpush1.bf16.msra.mxu0 0
    %159 = vmatprep.subr.bf16.mxu0 0
    %160 = vmatpush1.bf16.msra.mxu0 0
    %161 = vmatprep.subr.bf16.mxu0 0
    %162 = vmatpush1.bf16.msra.mxu0 0
    %163 = vmatprep.subr.bf16.mxu0 0
    %164 = vmatpush1.bf16.msra.mxu0 0
    %165 = vmatprep.subr.bf16.mxu0 0
    %166 = vmatpush1.bf16.msra.mxu0 %v147
    %167 = vmatprep.subr.bf16.mxu0 0
    %168 = vmatpush1.bf16.msra.mxu0 %v146
    %169 = vmatprep.subr.bf16.mxu0 0
    %170 = vmatpush2.bf16.msra.mxu0 0
    %171 = vmatprep.subr.bf16.mxu0 0
    %172 = vmatpush2.bf16.msra.mxu0 0
    %173 = vmatprep.subr.bf16.mxu0 0
    %174 = vmatpush2.bf16.msra.mxu0 0
    %175 = vmatprep.subr.bf16.mxu0 0
    %176 = vmatpush2.bf16.msra.mxu0 0
    %177 = vmatprep.subr.bf16.mxu0 0
    %178 = vmatpush2.bf16.msra.mxu0 0
    %179 = vmatprep.subr.bf16.mxu0 0
    %180 = vmatpush2.bf16.msra.mxu0 0
    %181 = vmatprep.subr.bf16.mxu0 0
    %182 = vmatpush2.bf16.msra.mxu0 0
    %183 = vmatprep.subr.bf16.mxu0 0
    %184 = vmatpush2.bf16.msra.mxu0 0
    %185 = vmatprep.mubr.bf16.mxu0 0
    %186 = vmatmul.mubr.bf16.gmra.mxu0 %v151
    %v187 = vpop.f32.mrf.mxu0
    %v188 = vadd.f32 0.0, %v187
    %v189 = vpop.f32.mrf.mxu0
    %v190 = vpop.f32.mrf.mxu0
    %v191 = vpop.f32.mrf.mxu0
    %192 = vdwg.mxu0
    %v193 = vadd.f32 %v130, %v188
    %194 = vst [vmem:[%s129] sm:$0xff] %v193
    %s195 = scalar_lea.vmem [#allocation8], 16
    %v196 = vld [vmem:[%s195] sm:$0xff]
    %s197 = scalar_lea.vmem [#allocation2], 8
    %v198 = vld [vmem:[%s197] sm:$0xf]
    %s199 = scalar_lea.vmem [#allocation5], 32
    %v200 = vld [vmem:[%s199] sm:$0xf]
    %v201 = vld [vmem:[%s199 + $0x4] sm:$0xf]
    %v202 = vld [vmem:[%s199 + $0x8] sm:$0xf]
    %v203 = vld [vmem:[%s199 + $0xc] sm:$0xf]
    %v208 = vunpack.c.l.b16 %v200
    %v209 = vunpack.c.l.b16 %v201
    %v210 = vunpack.c.l.b16 %v202
    %v211 = vunpack.c.l.b16 %v203
    %v212 = vpack.c.b16 %v209, %v208
    %v213 = vpack.c.b16 %v211, %v210
    %v217 = vsel %vm83, %v198, 0
    %219 = vmatprep.subr.bf16.mxu0 0
    %220 = vmatpush1.bf16.msra.mxu0 0
    %221 = vmatprep.subr.bf16.mxu0 0
    %222 = vmatpush1.bf16.msra.mxu0 0
    %223 = vmatprep.subr.bf16.mxu0 0
    %224 = vmatpush1.bf16.msra.mxu0 0
    %225 = vmatprep.subr.bf16.mxu0 0
    %226 = vmatpush1.bf16.msra.mxu0 0
    %227 = vmatprep.subr.bf16.mxu0 0
    %228 = vmatpush1.bf16.msra.mxu0 0
    %229 = vmatprep.subr.bf16.mxu0 0
    %230 = vmatpush1.bf16.msra.mxu0 0
    %231 = vmatprep.subr.bf16.mxu0 0
    %232 = vmatpush1.bf16.msra.mxu0 %v213
    %233 = vmatprep.subr.bf16.mxu0 0
    %234 = vmatpush1.bf16.msra.mxu0 %v212
    %235 = vmatprep.subr.bf16.mxu0 0
    %236 = vmatpush2.bf16.msra.mxu0 0
    %237 = vmatprep.subr.bf16.mxu0 0
    %238 = vmatpush2.bf16.msra.mxu0 0
    %239 = vmatprep.subr.bf16.mxu0 0
    %240 = vmatpush2.bf16.msra.mxu0 0
    %241 = vmatprep.subr.bf16.mxu0 0
    %242 = vmatpush2.bf16.msra.mxu0 0
    %243 = vmatprep.subr.bf16.mxu0 0
    %244 = vmatpush2.bf16.msra.mxu0 0
    %245 = vmatprep.subr.bf16.mxu0 0
    %246 = vmatpush2.bf16.msra.mxu0 0
    %247 = vmatprep.subr.bf16.mxu0 0
    %248 = vmatpush2.bf16.msra.mxu0 0
    %249 = vmatprep.subr.bf16.mxu0 0
    %250 = vmatpush2.bf16.msra.mxu0 0
    %251 = vmatprep.mubr.bf16.mxu0 0
    %252 = vmatmul.mubr.bf16.gmra.mxu0 %v217
    %v253 = vpop.f32.mrf.mxu0
    %v254 = vadd.f32 0.0, %v253
    %v255 = vpop.f32.mrf.mxu0
    %v256 = vpop.f32.mrf.mxu0
    %v257 = vpop.f32.mrf.mxu0
    %258 = vdwg.mxu0
    %v259 = vadd.f32 %v196, %v254
    %260 = vst [vmem:[%s195] sm:$0xff] %v259
    %s261 = scalar_lea.vmem [#allocation8], 24
    %v262 = vld [vmem:[%s261] sm:$0xff]
    %s263 = scalar_lea.vmem [#allocation2], 12
    %v264 = vld [vmem:[%s263] sm:$0xf]
    %s265 = scalar_lea.vmem [#allocation5], 48
    %v266 = vld [vmem:[%s265] sm:$0xf]
    %v267 = vld [vmem:[%s265 + $0x4] sm:$0xf]
    %v268 = vld [vmem:[%s265 + $0x8] sm:$0xf]
    %v269 = vld [vmem:[%s265 + $0xc] sm:$0xf]
    %v274 = vunpack.c.l.b16 %v266
    %v275 = vunpack.c.l.b16 %v267
    %v276 = vunpack.c.l.b16 %v268
    %v277 = vunpack.c.l.b16 %v269
    %v278 = vpack.c.b16 %v275, %v274
    %v279 = vpack.c.b16 %v277, %v276
    %v283 = vsel %vm83, %v264, 0
    %285 = vmatprep.subr.bf16.mxu0 0
    %286 = vmatpush1.bf16.msra.mxu0 0
    %287 = vmatprep.subr.bf16.mxu0 0
    %288 = vmatpush1.bf16.msra.mxu0 0
    %289 = vmatprep.subr.bf16.mxu0 0
    %290 = vmatpush1.bf16.msra.mxu0 0
    %291 = vmatprep.subr.bf16.mxu0 0
    %292 = vmatpush1.bf16.msra.mxu0 0
    %293 = vmatprep.subr.bf16.mxu0 0
    %294 = vmatpush1.bf16.msra.mxu0 0
    %295 = vmatprep.subr.bf16.mxu0 0
    %296 = vmatpush1.bf16.msra.mxu0 0
    %297 = vmatprep.subr.bf16.mxu0 0
    %298 = vmatpush1.bf16.msra.mxu0 %v279
    %299 = vmatprep.subr.bf16.mxu0 0
    %300 = vmatpush1.bf16.msra.mxu0 %v278
    %301 = vmatprep.subr.bf16.mxu0 0
    %302 = vmatpush2.bf16.msra.mxu0 0
    %303 = vmatprep.subr.bf16.mxu0 0
    %304 = vmatpush2.bf16.msra.mxu0 0
    %305 = vmatprep.subr.bf16.mxu0 0
    %306 = vmatpush2.bf16.msra.mxu0 0
    %307 = vmatprep.subr.bf16.mxu0 0
    %308 = vmatpush2.bf16.msra.mxu0 0
    %309 = vmatprep.subr.bf16.mxu0 0
    %310 = vmatpush2.bf16.msra.mxu0 0
    %311 = vmatprep.subr.bf16.mxu0 0
    %312 = vmatpush2.bf16.msra.mxu0 0
    %313 = vmatprep.subr.bf16.mxu0 0
    %314 = vmatpush2.bf16.msra.mxu0 0
    %315 = vmatprep.subr.bf16.mxu0 0
    %316 = vmatpush2.bf16.msra.mxu0 0
    %317 = vmatprep.mubr.bf16.mxu0 0
    %318 = vmatmul.mubr.bf16.gmra.mxu0 %v283
    %v319 = vpop.f32.mrf.mxu0
    %v320 = vadd.f32 0.0, %v319
    %v321 = vpop.f32.mrf.mxu0
    %v322 = vpop.f32.mrf.mxu0
    %v323 = vpop.f32.mrf.mxu0
    %324 = vdwg.mxu0
    %v325 = vadd.f32 %v262, %v320
    %326 = vst [vmem:[%s261] sm:$0xff] %v325
    // Predicated region
    $region30: #{tpu_custom_call.1} parent=1 // pred_check
      %p327 = pneg %p57
    $region31: #{tpu_custom_call.1} parent=1 // pred_check_branch
      %329 = sbr.rel (%p327) target = $region33
    $region32: #{tpu_custom_call.1} parent=1 // pred_region
      %v330 = vld [vmem:[#allocation8] sm:$0xff]
      %v331 = vld [vmem:[#allocation8 + $0x8] sm:$0xff]
      %v332 = vld [vmem:[#allocation8 + $0x10] sm:$0xff]
      %v333 = vld [vmem:[#allocation8 + $0x18] sm:$0xff]
      %v334 = vld [vmem:[#allocation7] sm:$0x1]
      %v335 = vld [vmem:[#allocation7 + $0x1] sm:$0x1]
      %v336 = vld [vmem:[#allocation7 + $0x2] sm:$0x1]
      %v337 = vld [vmem:[#allocation7 + $0x3] sm:$0x1]
      %v342 = vlaneseq
      %v343 = vshrl.u32 %v342, 7
      %v344 = vsub.s32 0, %v343
      %v345 = vrot.slane %v334, %v344
      %v346 = vlaneseq
      %v347 = vshrl.u32 %v346, 7
      %v348 = vsub.s32 0, %v347
      %v349 = vrot.slane %v335, %v348
      %v350 = vlaneseq
      %v351 = vshrl.u32 %v350, 7
      %v352 = vsub.s32 0, %v351
      %v353 = vrot.slane %v336, %v352
      %v354 = vlaneseq
      %v355 = vshrl.u32 %v354, 7
      %v356 = vsub.s32 0, %v355
      %v357 = vrot.slane %v337, %v356
      %v362 = vadd.f32 %v330, %v345
      %v363 = vadd.f32 %v331, %v349
      %v364 = vadd.f32 %v332, %v353
      %v365 = vadd.f32 %v333, %v357
      %v366 = vsub.f32 0.0, %v362
      %v367 = vsub.f32 0.0, %v363
      %v368 = vsub.f32 0.0, %v364
      %v369 = vsub.f32 0.0, %v365
      %v370 = vmul.f32 %v366, 1.442695
      %v371 = vpow.pop %v370
      %v372 = vmul.f32 %v367, 1.442695
      %v373 = vpow.pop %v372
      %v374 = vmul.f32 %v368, 1.442695
      %v375 = vpow.pop %v374
      %v376 = vmul.f32 %v369, 1.442695
      %v377 = vpow.pop %v376
      %v378 = vadd.f32 %v371, 1.0
      %v379 = vadd.f32 %v373, 1.0
      %v380 = vadd.f32 %v375, 1.0
      %v381 = vadd.f32 %v377, 1.0
      %v382 = vrcp.pop %v378
      %v383 = vrcp.pop %v379
      %v384 = vrcp.pop %v380
      %v385 = vrcp.pop %v381
      %v386 = vmul.f32 %v362, %v382
      %v387 = vmul.f32 %v363, %v383
      %v388 = vmul.f32 %v364, %v384
      %v389 = vmul.f32 %v365, %v385
      %390 = vst [vmem:[#allocation8] sm:$0xff] %v386
      %391 = vst [vmem:[#allocation8 + $0x8] sm:$0xff] %v387
      %392 = vst [vmem:[#allocation8 + $0x10] sm:$0xff] %v388
      %393 = vst [vmem:[#allocation8 + $0x18] sm:$0xff] %v389
    $region33: #{tpu_custom_call.1} parent=1 // pred_fallthru
      _
    // Predicated region
    $region34: #{tpu_custom_call.1} parent=1 // pred_check
      _
    $region35: #{tpu_custom_call.1} parent=1 // pred_check_branch
      %395 = sbr.rel (0) target = $region37
    $region36: #{tpu_custom_call.1} parent=1 // pred_region
      %s397 = ssub.s32 512, 512
      %398 = vsyncadd [#allocation4], %s397
      %s399 = sshll.u32 [#allocation8], 4
      %s400 = int_to_ptr.vmem [resolvable:$true] %s399
      %405 = dma.vmem_to_hbm [thread:$0]  %s400, 512, %s3, [#allocation4], 128, 128, 8
    $region37: #{tpu_custom_call.1} parent=1 // pred_fallthru
      _
    // Predicated region
    $region38: #{tpu_custom_call.1} parent=1 // pred_check
      _
    $region39: #{tpu_custom_call.1} parent=1 // pred_check_branch
      %407 = sbr.rel (0) target = $region41
    $region40: #{tpu_custom_call.1} parent=1 // pred_region
      %408 = dma.done [#allocation4], 512
    $region41: #{tpu_custom_call.1} parent=1 // pred_fallthru
      _
    %409 = vsyncpa [#allocation3], 1
    %410 = vsyncpa [#allocation6], 1
    %411 = vsyncpa [#allocation4], 1

</llo_original>
